<compile_context>
chip_gen: v7x
topology: tpu7x:2x2x1
jax: 0.10.0
libtpu: 0.0.40
codegen_flags: <defaults>
</compile_context>

<pallas_src>
from typing import NamedTuple

import jax
import jax.numpy as jnp
from jax.experimental import pallas as pl
from jax.experimental.pallas import tpu as pltpu


class Args(NamedTuple):
    t_relative: bool = True
    reward_latent_dim: int = 32


_MAX_BLOCK_B = 8192  # max batch rows per grid step


def _round_up(x: int, m: int) -> int:
    return ((x + m - 1) // m) * m


def _choose_block_b(B: int) -> int:
    """128-aligned batch block; for large B use an even #blocks (v7x 2-TC balance)."""
    if B <= 1024:
        return _round_up(B, 128)          # single block, full-lane output store
    nblocks = max(2, pl.cdiv(B, _MAX_BLOCK_B))
    if nblocks % 2:
        nblocks += 1                      # even split across the two TensorCores
    return _round_up(pl.cdiv(B, nblocks), 128)


# ----------------------------------------------------------------------------
# Kernel
# ----------------------------------------------------------------------------
def _reward_mlp_kernel(obs_ref, goal_ref, w1_ref, w23_ref, b1_ref, hp_ref, o_ref):
    # obs_ref/goal_ref: (block_b, dimu) f32|bf16  raw inputs, batch on sublanes
    # w1_ref:           (2, dimu, H)    bf16      [A_obs^T, A_goal^T] (glue folded in)
    # w23_ref:          (2, H, H)       bf16      [W2, W3] (out, in)
    # b1_ref:           (1, H)          f32       layer-1 bias (row, batch-major add)
    # hp_ref:           (H, 4)          f32       [:,0]=b2  [:,1]=b3  [:,2]=w4  [0,3]=b4
    # o_ref:            (1, block_b)    f32       lane-dense reward row
    f32 = jnp.float32
    bf16 = jnp.bfloat16

    xo = obs_ref[...].astype(bf16)                                     # (blk, dimu)
    xg = goal_ref[...].astype(bf16)

    # Layer 1, batch-major: two plain MXU dots (no concat / input transpose).
    z1 = (jnp.dot(xo, w1_ref[0], preferred_element_type=f32)
          + jnp.dot(xg, w1_ref[1], preferred_element_type=f32))        # (blk, H)
    h = jnp.maximum(z1 + b1_ref[...], 0.0)                             # f32 bias/ReLU

    # One transpose to feature-major: batch rides the 128-lane axis from here on.
    h = h.T.astype(bf16)                                               # (H, blk)

    # Layers 2 & 3: bf16 MXU matmuls, f32 accumulate/bias/ReLU.
    for layer in range(2):
        z = jnp.dot(w23_ref[layer], h, preferred_element_type=f32)     # (H, blk)
        h = jnp.maximum(z + hp_ref[:, layer:layer + 1], 0.0).astype(bf16)

    # Head Linear(H -> 1): f32 multiply + per-lane sublane reduce -> (1, blk) row.
    w4 = hp_ref[:, 2:3]                                                # (H, 1) f32
    b4 = hp_ref[0:1, 3:4]                                              # (1, 1) f32
    out = jnp.sum(h.astype(f32) * w4, axis=0, keepdims=True) + b4      # (1, blk)
    o_ref[...] = out.astype(o_ref.dtype)


# ----------------------------------------------------------------------------
# Parameter handling
# ----------------------------------------------------------------------------
def init_params(key, input_dim, hidden_dim, dtype=jnp.float32):
    """Deterministic synthetic init, PyTorch nn.Linear layout: w (out,in), b (out,)."""
    ks = jax.random.split(key, 8)

    def lin(kw, kb, fan_in, fan_out):
        bound = 1.0 / (fan_in ** 0.5)
        w = jax.random.uniform(kw, (fan_out, fan_in), dtype, -bound, bound)
        b = jax.random.uniform(kb, (fan_out,), dtype, -0.1, 0.1)
        return w, b

    w1, b1 = lin(ks[0], ks[1], input_dim, hidden_dim)
    w2, b2 = lin(ks[2], ks[3], hidden_dim, hidden_dim)
    w3, b3 = lin(ks[4], ks[5], hidden_dim, hidden_dim)
    w4, b4 = lin(ks[6], ks[7], hidden_dim, 1)
    return {"w1": w1, "b1": b1, "w2": w2, "b2": b2,
            "w3": w3, "b3": b3, "w4": w4, "b4": b4}


def pack_params(params, *, dimu, t_relative):
    """One-time repack: fold the t_relative glue into layer 1 and stack weights.

    W1 @ [z_obs; z_goal; t_goal - t_obs] == A_obs @ obs^T + A_goal @ goal^T
    with A_obs = [W_zobs | -W_t], A_goal = [W_zgoal | W_t].
    Head weight w4 and all biases stay f32 (only MXU operands go bf16).
    """
    w1, w2, w3, w4 = params["w1"], params["w2"], params["w3"], params["w4"]
    b1, b2, b3, b4 = params["b1"], params["b2"], params["b3"], params["b4"]
    H = w1.shape[0]

    if t_relative:
        dz = dimu - 3
        wt = w1[:, 2 * dz:]                                           # (H, 3)
        a_obs = jnp.concatenate([w1[:, :dz], -wt], axis=1)            # (H, dimu)
        a_goal = jnp.concatenate([w1[:, dz:2 * dz], wt], axis=1)      # (H, dimu)
    else:
        a_obs, a_goal = w1[:, :dimu], w1[:, dimu:]

    w1s = jnp.stack([a_obs.T, a_goal.T]).astype(jnp.bfloat16)         # (2, dimu, H)
    w23s = jnp.stack([w2, w3]).astype(jnp.bfloat16)                   # (2, H, H)
    b1row = b1.reshape(1, H).astype(jnp.float32)                      # (1, H)

    hp = jnp.zeros((H, 4), jnp.float32)                               # f32 head pack
    hp = hp.at[:, 0].set(b2).at[:, 1].set(b3).at[:, 2].set(w4[0]).at[0, 3].set(b4[0])

    return {"w1": w1s, "w23": w23s, "b1": b1row, "hp": hp}


# ----------------------------------------------------------------------------
# Forward (pallas_call wrapper) — no transpose/cast/pad of inputs in the wrapper.
# ----------------------------------------------------------------------------
@jax.jit
def reward_predictor_forward(obs, goal, packed):
    """pred = network(glue(obs, goal))[:, 0], fully fused in one Pallas kernel."""
    w1s, w23s, b1, hp = packed["w1"], packed["w23"], packed["b1"], packed["hp"]
    B, dimu = obs.shape
    _, _, H = w1s.shape

    block_b = _choose_block_b(B)
    grid_b = pl.cdiv(B, block_b)

    flops = B * (4 * dimu * H + 4 * H * H + 2 * H)
    bytes_accessed = (obs.size * obs.dtype.itemsize + goal.size * goal.dtype.itemsize
                      + (w1s.size + w23s.size) * 2 + (b1.size + hp.size) * 4 + B * 4)

    out = pl.pallas_call(
        _reward_mlp_kernel,
        out_shape=jax.ShapeDtypeStruct((1, B), jnp.float32),
        grid_spec=pltpu.PrefetchScalarGridSpec(
            num_scalar_prefetch=0,
            grid=(grid_b,),
            in_specs=[
                pl.BlockSpec((block_b, dimu), lambda i: (i, 0)),
                pl.BlockSpec((block_b, dimu), lambda i: (i, 0)),
                # Constant index_map => params fetched once, VMEM-resident.
                pl.BlockSpec(w1s.shape, lambda i: (0, 0, 0)),
                pl.BlockSpec(w23s.shape, lambda i: (0, 0, 0)),
                pl.BlockSpec(b1.shape, lambda i: (0, 0)),
                pl.BlockSpec(hp.shape, lambda i: (0, 0)),
            ],
            out_specs=pl.BlockSpec((1, block_b), lambda i: (0, i)),
        ),
        compiler_params=pltpu.CompilerParams(
            dimension_semantics=("parallel",)),
        cost_estimate=pl.CostEstimate(
            flops=int(flops), transcendentals=0,
            bytes_accessed=int(bytes_accessed)),
    )(obs, goal, w1s, w23s, b1, hp)
    return out[0]


# ----------------------------------------------------------------------------
# References
# ----------------------------------------------------------------------------
def reward_predictor_reference_f32(obs, goal, params, *, t_relative):
    """Faithful f32 re-implementation of the PyTorch module."""
    obs = obs.astype(jnp.float32)
    goal = goal.astype(jnp.float32)
    if t_relative:
        z_obs, t_obs = obs[:, :-3], obs[:, -3:]
        z_goal, t_goal = goal[:, :-3], goal[:, -3:]
        x = jnp.concatenate([z_obs, z_goal, t_goal - t_obs], axis=1)
    else:
        x = jnp.concatenate([obs, goal], axis=1)
    h = jax.nn.relu(x @ params["w1"].T + params["b1"])
    h = jax.nn.relu(h @ params["w2"].T + params["b2"])
    h = jax.nn.relu(h @ params["w3"].T + params["b3"])
    return (h @ params["w4"].T + params["b4"])[:, 0]


def reward_predictor_reference_packed(obs, goal, packed):
    """XLA emulation of the exact kernel math (bf16 matmuls, f32 accumulate)."""
    f32, bf16 = jnp.float32, jnp.bfloat16
    w1s, w23s, b1, hp = packed["w1"], packed["w23"], packed["b1"], packed["hp"]
    z1 = (jnp.dot(obs.astype(bf16), w1s[0], preferred_element_type=f32)
          + jnp.dot(goal.astype(bf16), w1s[1], preferred_element_type=f32))
    h = jnp.maximum(z1 + b1, 0.0).T.astype(bf16)
    for layer in range(2):
        z = jnp.dot(w23s[layer], h, preferred_element_type=f32)
        h = jnp.maximum(z + hp[:, layer:layer + 1], 0.0).astype(bf16)
    return jnp.sum(h.astype(f32) * hp[:, 2:3], axis=0) + hp[0, 3]


# ----------------------------------------------------------------------------
if __name__ == "__main__":
    args = Args(t_relative=True, reward_latent_dim=32)
    dimu = 16
    batch = 8

    input_dim = dimu * 2 - (3 if args.t_relative else 0)   # 29
    hidden_dim = args.reward_latent_dim                    # 32

    key = jax.random.PRNGKey(0)
    k_obs, k_goal, k_params, k_big = jax.random.split(key, 4)
    obs = jax.random.normal(k_obs, (batch, dimu), jnp.float32)
    goal = jax.random.normal(k_goal, (batch, dimu), jnp.float32)

    params = init_params(k_params, input_dim, hidden_dim)
    packed = pack_params(params, dimu=dimu, t_relative=args.t_relative)

    # --- small-batch check (single 128-lane block, ragged batch) ---
    pred = jax.block_until_ready(reward_predictor_forward(obs, goal, packed))
    assert pred.shape == (batch,), pred.shape
    ref_exact = reward_predictor_reference_packed(obs, goal, packed)
    ref_f32 = reward_predictor_reference_f32(obs, goal, params,
                                             t_relative=args.t_relative)
    assert jnp.allclose(pred, ref_exact, atol=2e-3, rtol=2e-3), (pred, ref_exact)
    # vs. full-f32 semantics: only bf16 weight/activation rounding error.
    assert jnp.allclose(pred, ref_f32, atol=5e-2, rtol=5e-2), (pred, ref_f32)

    # --- multi-block path: ragged tail + even split across v7x TensorCores ---
    big = 2600
    kb1, kb2 = jax.random.split(k_big)
    obs_b = jax.random.normal(kb1, (big, dimu), jnp.float32)
    goal_b = jax.random.normal(kb2, (big, dimu), jnp.float32)
    pred_b = jax.block_until_ready(reward_predictor_forward(obs_b, goal_b, packed))
    assert pred_b.shape == (big,), pred_b.shape
    ref_b = reward_predictor_reference_packed(obs_b, goal_b, packed)
    assert jnp.allclose(pred_b, ref_b, atol=2e-3, rtol=2e-3)

    # --- bf16-input fast path (halves input DMA; identical kernel math) ---
    obs_h, goal_h = obs_b.astype(jnp.bfloat16), goal_b.astype(jnp.bfloat16)
    pred_h = jax.block_until_ready(reward_predictor_forward(obs_h, goal_h, packed))
    ref_h = reward_predictor_reference_packed(obs_h, goal_h, packed)
    assert jnp.allclose(pred_h, ref_h, atol=2e-3, rtol=2e-3)

    # --- t_relative=False branch ---
    params2 = init_params(jax.random.PRNGKey(1), dimu * 2, hidden_dim)
    packed2 = pack_params(params2, dimu=dimu, t_relative=False)
    pred2 = jax.block_until_ready(reward_predictor_forward(obs, goal, packed2))
    ref2 = reward_predictor_reference_f32(obs, goal, params2, t_relative=False)
    assert jnp.allclose(pred2, ref2, atol=5e-2, rtol=5e-2)

    print("KERNEL_OK")
</pallas_src>

<mosaic_0001>
module attributes {stable_mosaic.version = 11 : i64} {
  func.func @_reward_mlp_kernel(%arg0: i32, %arg1: memref<128x16xf32, #tpu.memory_space<vmem>>, %arg2: memref<128x16xf32, #tpu.memory_space<vmem>>, %arg3: memref<2x16x32xbf16, #tpu.memory_space<vmem>>, %arg4: memref<2x32x32xbf16, #tpu.memory_space<vmem>>, %arg5: memref<1x32xf32, #tpu.memory_space<vmem>>, %arg6: memref<32x4xf32, #tpu.memory_space<vmem>>, %arg7: memref<1x128xf32, #tpu.memory_space<vmem>>) attributes {dimension_semantics = [#tpu.dimension_semantics<parallel>], iteration_bounds = array<i64: 1>, scalar_prefetch = 0 : i64, scratch_operands = 0 : i64, tpu.core_type = #tpu.core_type<tc>, window_params = [{transform_indices = @transform_0, window_bounds = array<i64: 128, 16>}, {transform_indices = @transform_1, window_bounds = array<i64: 128, 16>}, {pipeline_mode = #tpu.pipeline_mode<synchronous>, transform_indices = @transform_2, window_bounds = array<i64: 2, 16, 32>}, {pipeline_mode = #tpu.pipeline_mode<synchronous>, transform_indices = @transform_3, window_bounds = array<i64: 2, 32, 32>}, {pipeline_mode = #tpu.pipeline_mode<synchronous>, transform_indices = @transform_4, window_bounds = array<i64: 1, 32>}, {pipeline_mode = #tpu.pipeline_mode<synchronous>, transform_indices = @transform_5, window_bounds = array<i64: 32, 4>}, {transform_indices = @transform_6, window_bounds = array<i64: 1, 128>}]} {
    %c0 = arith.constant 0 : index
    %c0_0 = arith.constant 0 : index
    %0 = vector.load %arg1[%c0, %c0_0] : memref<128x16xf32, #tpu.memory_space<vmem>>, vector<128x16xf32>
    %1 = arith.truncf %0 : vector<128x16xf32> to vector<128x16xbf16>
    %c0_1 = arith.constant 0 : index
    %c0_2 = arith.constant 0 : index
    %2 = vector.load %arg2[%c0_1, %c0_2] : memref<128x16xf32, #tpu.memory_space<vmem>>, vector<128x16xf32>
    %3 = arith.truncf %2 : vector<128x16xf32> to vector<128x16xbf16>
    %c0_3 = arith.constant 0 : index
    %c0_4 = arith.constant 0 : index
    %c0_5 = arith.constant 0 : index
    %4 = vector.load %arg3[%c0_3, %c0_4, %c0_5] : memref<2x16x32xbf16, #tpu.memory_space<vmem>>, vector<1x16x32xbf16>
    %5 = vector.shape_cast %4 : vector<1x16x32xbf16> to vector<16x32xbf16>
    %cst = arith.constant dense<0.000000e+00> : vector<128x32xf32>
    %6 = tpu.matmul %1, %5, %cst {dimension_numbers = #tpu.dot_dimension_numbers<[1], [0], [0], [1], [0, 0, 1, 1], [], []>} : vector<128x16xbf16>, vector<16x32xbf16>, vector<128x32xf32> -> vector<128x32xf32>
    %c1 = arith.constant 1 : index
    %c0_6 = arith.constant 0 : index
    %c0_7 = arith.constant 0 : index
    %7 = vector.load %arg3[%c1, %c0_6, %c0_7] : memref<2x16x32xbf16, #tpu.memory_space<vmem>>, vector<1x16x32xbf16>
    %8 = vector.shape_cast %7 : vector<1x16x32xbf16> to vector<16x32xbf16>
    %cst_8 = arith.constant dense<0.000000e+00> : vector<128x32xf32>
    %9 = tpu.matmul %3, %8, %cst_8 {dimension_numbers = #tpu.dot_dimension_numbers<[1], [0], [0], [1], [0, 0, 1, 1], [], []>} : vector<128x16xbf16>, vector<16x32xbf16>, vector<128x32xf32> -> vector<128x32xf32>
    %10 = arith.addf %6, %9 : vector<128x32xf32>
    %c0_9 = arith.constant 0 : index
    %c0_10 = arith.constant 0 : index
    %11 = vector.load %arg5[%c0_9, %c0_10] : memref<1x32xf32, #tpu.memory_space<vmem>>, vector<1x32xf32>
    %12 = vector.broadcast %11 : vector<1x32xf32> to vector<128x32xf32>
    %13 = arith.addf %10, %12 : vector<128x32xf32>
    %cst_11 = arith.constant 0.000000e+00 : f32
    %14 = vector.broadcast %cst_11 : f32 to vector<128x32xf32>
    %15 = arith.maximumf %13, %14 : vector<128x32xf32>
    %16 = tpu.transpose %15, [1, 0] : vector<128x32xf32> -> vector<32x128xf32>
    %17 = arith.truncf %16 : vector<32x128xf32> to vector<32x128xbf16>
    %c0_12 = arith.constant 0 : index
    %c0_13 = arith.constant 0 : index
    %c0_14 = arith.constant 0 : index
    %18 = vector.load %arg4[%c0_12, %c0_13, %c0_14] : memref<2x32x32xbf16, #tpu.memory_space<vmem>>, vector<1x32x32xbf16>
    %19 = vector.shape_cast %18 : vector<1x32x32xbf16> to vector<32x32xbf16>
    %cst_15 = arith.constant dense<0.000000e+00> : vector<32x128xf32>
    %20 = tpu.matmul %19, %17, %cst_15 {dimension_numbers = #tpu.dot_dimension_numbers<[1], [0], [0], [1], [0, 0, 1, 1], [], []>} : vector<32x32xbf16>, vector<32x128xbf16>, vector<32x128xf32> -> vector<32x128xf32>
    %c0_16 = arith.constant 0 : index
    %c0_17 = arith.constant 0 : index
    %21 = vector.load %arg6[%c0_16, %c0_17] : memref<32x4xf32, #tpu.memory_space<vmem>>, vector<32x1xf32>
    %22 = vector.broadcast %21 : vector<32x1xf32> to vector<32x128xf32>
    %23 = arith.addf %20, %22 : vector<32x128xf32>
    %cst_18 = arith.constant 0.000000e+00 : f32
    %24 = vector.broadcast %cst_18 : f32 to vector<32x128xf32>
    %25 = arith.maximumf %23, %24 : vector<32x128xf32>
    %26 = arith.truncf %25 : vector<32x128xf32> to vector<32x128xbf16>
    %c1_19 = arith.constant 1 : index
    %c0_20 = arith.constant 0 : index
    %c0_21 = arith.constant 0 : index
    %27 = vector.load %arg4[%c1_19, %c0_20, %c0_21] : memref<2x32x32xbf16, #tpu.memory_space<vmem>>, vector<1x32x32xbf16>
    %28 = vector.shape_cast %27 : vector<1x32x32xbf16> to vector<32x32xbf16>
    %cst_22 = arith.constant dense<0.000000e+00> : vector<32x128xf32>
    %29 = tpu.matmul %28, %26, %cst_22 {dimension_numbers = #tpu.dot_dimension_numbers<[1], [0], [0], [1], [0, 0, 1, 1], [], []>} : vector<32x32xbf16>, vector<32x128xbf16>, vector<32x128xf32> -> vector<32x128xf32>
    %c0_23 = arith.constant 0 : index
    %c1_24 = arith.constant 1 : index
    %30 = vector.load %arg6[%c0_23, %c1_24] : memref<32x4xf32, #tpu.memory_space<vmem>>, vector<32x1xf32>
    %31 = vector.broadcast %30 : vector<32x1xf32> to vector<32x128xf32>
    %32 = arith.addf %29, %31 : vector<32x128xf32>
    %cst_25 = arith.constant 0.000000e+00 : f32
    %33 = vector.broadcast %cst_25 : f32 to vector<32x128xf32>
    %34 = arith.maximumf %32, %33 : vector<32x128xf32>
    %35 = arith.truncf %34 : vector<32x128xf32> to vector<32x128xbf16>
    %c0_26 = arith.constant 0 : index
    %c2 = arith.constant 2 : index
    %36 = vector.load %arg6[%c0_26, %c2] : memref<32x4xf32, #tpu.memory_space<vmem>>, vector<32x1xf32>
    %c0_27 = arith.constant 0 : index
    %c3 = arith.constant 3 : index
    %37 = vector.load %arg6[%c0_27, %c3] : memref<32x4xf32, #tpu.memory_space<vmem>>, vector<1x1xf32>
    %38 = arith.extf %35 : vector<32x128xbf16> to vector<32x128xf32>
    %39 = vector.broadcast %36 : vector<32x1xf32> to vector<32x128xf32>
    %40 = arith.mulf %38, %39 : vector<32x128xf32>
    %cst_28 = arith.constant dense<0.000000e+00> : vector<128xf32>
    %41 = vector.multi_reduction <add>, %40, %cst_28 [0] : vector<32x128xf32> to vector<128xf32>
    %42 = vector.shape_cast %41 : vector<128xf32> to vector<1x128xf32>
    %43 = vector.broadcast %37 : vector<1x1xf32> to vector<1x128xf32>
    %44 = arith.addf %42, %43 : vector<1x128xf32>
    %c0_29 = arith.constant 0 : index
    %c0_30 = arith.constant 0 : index
    %45 = vector.load %arg7[%c0_29, %c0_30] : memref<1x128xf32, #tpu.memory_space<vmem>>, vector<1x128xf32>
    tpu.vector_store %arg7[%c0_29, %c0_30], %44 {strides = array<i32>} : memref<1x128xf32, #tpu.memory_space<vmem>>, vector<1x128xf32>,
    return
  }
  func.func @transform_0(%arg0: i32) -> (i32, i32) {
    %c0_i32 = arith.constant 0 : i32
    %c0_i32_0 = arith.constant 0 : i32
    return %arg0, %c0_i32 : i32, i32
  }
  func.func @transform_1(%arg0: i32) -> (i32, i32) {
    %c0_i32 = arith.constant 0 : i32
    %c0_i32_0 = arith.constant 0 : i32
    return %arg0, %c0_i32 : i32, i32
  }
  func.func @transform_2(%arg0: i32) -> (i32, i32, i32) {
    %c0_i32 = arith.constant 0 : i32
    %c0_i32_0 = arith.constant 0 : i32
    %c0_i32_1 = arith.constant 0 : i32
    %c0_i32_2 = arith.constant 0 : i32
    return %c0_i32, %c0_i32_0, %c0_i32_1 : i32, i32, i32
  }
  func.func @transform_3(%arg0: i32) -> (i32, i32, i32) {
    %c0_i32 = arith.constant 0 : i32
    %c0_i32_0 = arith.constant 0 : i32
    %c0_i32_1 = arith.constant 0 : i32
    %c0_i32_2 = arith.constant 0 : i32
    return %c0_i32, %c0_i32_0, %c0_i32_1 : i32, i32, i32
  }
  func.func @transform_4(%arg0: i32) -> (i32, i32) {
    %c0_i32 = arith.constant 0 : i32
    %c0_i32_0 = arith.constant 0 : i32
    %c0_i32_1 = arith.constant 0 : i32
    return %c0_i32, %c0_i32_0 : i32, i32
  }
  func.func @transform_5(%arg0: i32) -> (i32, i32) {
    %c0_i32 = arith.constant 0 : i32
    %c0_i32_0 = arith.constant 0 : i32
    %c0_i32_1 = arith.constant 0 : i32
    return %c0_i32, %c0_i32_0 : i32, i32
  }
  func.func @transform_6(%arg0: i32) -> (i32, i32) {
    %c0_i32 = arith.constant 0 : i32
    %c0_i32_0 = arith.constant 0 : i32
    return %c0_i32, %arg0 : i32, i32
  }
}

</mosaic_0001>

<llo_original>
// kernel: reward_predictor_forward.1
$region0: #{reward_predictor_forward.1}
  #allocation0 [shape = 'u32[]', space=smem, size = 0x4, offset = 0x4, fixed_abs, tag = 'smem constant byte address 0x4 - core index']
  #allocation1 [shape = 'u32[144,128]{1,0:T(1,128)}', space=vmem, size = 0x12000, scoped, tag = 'internal scratch']
  %s0 = inlined_call_operand.hbm [shape: f32[8,16], index: 0, kind: input, shape index: {}]
  %s1 = inlined_call_operand.hbm [shape: f32[8,16], index: 1, kind: input, shape index: {}]
  %s2 = inlined_call_operand.vmem [shape: bf16[2,16,32], index: 2, kind: input, shape index: {}]
  %s3 = inlined_call_operand.vmem [shape: bf16[2,32,32], index: 3, kind: input, shape index: {}]
  %s4 = inlined_call_operand.vmem [shape: f32[1,32], index: 4, kind: input, shape index: {}]
  %s5 = inlined_call_operand.vmem [shape: f32[32,4], index: 5, kind: input, shape index: {}]
  %s6 = inlined_call_operand.hbm [shape: f32[1,8], index: 6, kind: output, shape index: {}]
  %s7 = sld [smem:[#allocation0]]
  $region42: #{reward_predictor_forward.1} parent=0
    _
  %s9 = ssub.s32 1, %s7
  %s10 = scalar_select 0, %s9, %s7
  $region1: #{reward_predictor_forward.1} parent=0
    #allocation2 [shape = 'u8[65536]{0}', space=vmem, size = 0x10000, scoped, tag = 'input window, operand 0, single buffered']
    #allocation3 [shape = 's32[1]{0}', space=sflag, size = 0x4, scoped, tag = 'scoped memory for reward_predictor_forward.1']
    #allocation4 [shape = 's32[1]{0}', space=sflag, size = 0x4, scoped, tag = 'scoped memory for reward_predictor_forward.1']
    #allocation5 [shape = 'u8[65536]{0}', space=vmem, size = 0x10000, scoped, tag = 'input window, operand 1, single buffered']
    #allocation6 [shape = 's32[1]{0}', space=sflag, size = 0x4, scoped, tag = 'scoped memory for reward_predictor_forward.1']
    #allocation7 [shape = 'u8[512]{0}', space=vmem, size = 0x400, scoped, tag = 'output window, operand 0, single buffered']
    %11 = vsyncpa [#allocation3], 0
    %12 = vsyncpa [#allocation6], 0
    %13 = vsyncpa [#allocation4], 0
    // Predicated region
    $region2: #{reward_predictor_forward.1} parent=1 // pred_check
      _
    $region3: #{reward_predictor_forward.1} parent=1 // pred_check_branch
      %15 = sbr.rel (0) target = $region5
    $region4: #{reward_predictor_forward.1} parent=1 // pred_region
      %s17 = ssub.s32 2048, 128
      %18 = vsyncadd [#allocation3], %s17
      %s19 = sshll.u32 [#allocation2], 4
      %s20 = int_to_ptr.vmem [resolvable:$true] %s19
      %25 = dma.hbm_to_vmem [thread:$0]  %s0, 128, %s20, [#allocation3], 128, 128, 8
    $region5: #{reward_predictor_forward.1} parent=1 // pred_fallthru
      _
    // Predicated region
    $region6: #{reward_predictor_forward.1} parent=1 // pred_check
      _
    $region7: #{reward_predictor_forward.1} parent=1 // pred_check_branch
      %27 = sbr.rel (0) target = $region9
    $region8: #{reward_predictor_forward.1} parent=1 // pred_region
      %s29 = ssub.s32 2048, 128
      %30 = vsyncadd [#allocation6], %s29
      %s31 = sshll.u32 [#allocation5], 4
      %s32 = int_to_ptr.vmem [resolvable:$true] %s31
      %37 = dma.hbm_to_vmem [thread:$0]  %s1, 128, %s32, [#allocation6], 128, 128, 8
    $region9: #{reward_predictor_forward.1} parent=1 // pred_fallthru
      _
    // Predicated region
    $region10: #{reward_predictor_forward.1} parent=1 // pred_check
      _
    $region11: #{reward_predictor_forward.1} parent=1 // pred_check_branch
      %39 = sbr.rel (0) target = $region13
    $region12: #{reward_predictor_forward.1} parent=1 // pred_region
      _
    $region13: #{reward_predictor_forward.1} parent=1 // pred_fallthru
      _
    // Predicated region
    $region14: #{reward_predictor_forward.1} parent=1 // pred_check
      _
    $region15: #{reward_predictor_forward.1} parent=1 // pred_check_branch
      %41 = sbr.rel (0) target = $region17
    $region16: #{reward_predictor_forward.1} parent=1 // pred_region
      _
    $region17: #{reward_predictor_forward.1} parent=1 // pred_fallthru
      _
    // Predicated region
    $region18: #{reward_predictor_forward.1} parent=1 // pred_check
      _
    $region19: #{reward_predictor_forward.1} parent=1 // pred_check_branch
      %43 = sbr.rel (0) target = $region21
    $region20: #{reward_predictor_forward.1} parent=1 // pred_region
      _
    $region21: #{reward_predictor_forward.1} parent=1 // pred_fallthru
      _
    // Predicated region
    $region22: #{reward_predictor_forward.1} parent=1 // pred_check
      _
    $region23: #{reward_predictor_forward.1} parent=1 // pred_check_branch
      %45 = sbr.rel (0) target = $region25
    $region24: #{reward_predictor_forward.1} parent=1 // pred_region
      _
    $region25: #{reward_predictor_forward.1} parent=1 // pred_fallthru
      _
    // Predicated region
    $region26: #{reward_predictor_forward.1} parent=1 // pred_check
      _
    $region27: #{reward_predictor_forward.1} parent=1 // pred_check_branch
      %47 = sbr.rel (0) target = $region29
    $region28: #{reward_predictor_forward.1} parent=1 // pred_region
      %48 = dma.done [#allocation3], 2048
    $region29: #{reward_predictor_forward.1} parent=1 // pred_fallthru
      _
    // Predicated region
    $region30: #{reward_predictor_forward.1} parent=1 // pred_check
      _
    $region31: #{reward_predictor_forward.1} parent=1 // pred_check_branch
      %50 = sbr.rel (0) target = $region33
    $region32: #{reward_predictor_forward.1} parent=1 // pred_region
      %51 = dma.done [#allocation6], 2048
    $region33: #{reward_predictor_forward.1} parent=1 // pred_fallthru
      _
    %v53 = vld [vmem:[#allocation2] sm:$0xff]
    %v54 = vld [vmem:[#allocation2 + $0x8] sm:$0xff]
    %v55 = vld [vmem:[#allocation2 + $0x10] sm:$0xff]
    %v56 = vld [vmem:[#allocation2 + $0x18] sm:$0xff]
    %v57 = vld [vmem:[#allocation2 + $0x20] sm:$0xff]
    %v58 = vld [vmem:[#allocation2 + $0x28] sm:$0xff]
    %v59 = vld [vmem:[#allocation2 + $0x30] sm:$0xff]
    %v60 = vld [vmem:[#allocation2 + $0x38] sm:$0xff]
    %v61 = vld [vmem:[#allocation2 + $0x40] sm:$0xff]
    %v62 = vld [vmem:[#allocation2 + $0x48] sm:$0xff]
    %v63 = vld [vmem:[#allocation2 + $0x50] sm:$0xff]
    %v64 = vld [vmem:[#allocation2 + $0x58] sm:$0xff]
    %v65 = vld [vmem:[#allocation2 + $0x60] sm:$0xff]
    %v66 = vld [vmem:[#allocation2 + $0x68] sm:$0xff]
    %v67 = vld [vmem:[#allocation2 + $0x70] sm:$0xff]
    %v68 = vld [vmem:[#allocation2 + $0x78] sm:$0xff]
    %v69 = vpack.c.bf16 %v54, %v53
    %v70 = vpack.c.bf16 %v56, %v55
    %v71 = vpack.c.bf16 %v58, %v57
    %v72 = vpack.c.bf16 %v60, %v59
    %v73 = vpack.c.bf16 %v62, %v61
    %v74 = vpack.c.bf16 %v64, %v63
    %v75 = vpack.c.bf16 %v66, %v65
    %v76 = vpack.c.bf16 %v68, %v67
    %v77 = vld [vmem:[#allocation5] sm:$0xff]
    %v78 = vld [vmem:[#allocation5 + $0x8] sm:$0xff]
    %v79 = vld [vmem:[#allocation5 + $0x10] sm:$0xff]
    %v80 = vld [vmem:[#allocation5 + $0x18] sm:$0xff]
    %v81 = vld [vmem:[#allocation5 + $0x20] sm:$0xff]
    %v82 = vld [vmem:[#allocation5 + $0x28] sm:$0xff]
    %v83 = vld [vmem:[#allocation5 + $0x30] sm:$0xff]
    %v84 = vld [vmem:[#allocation5 + $0x38] sm:$0xff]
    %v85 = vld [vmem:[#allocation5 + $0x40] sm:$0xff]
    %v86 = vld [vmem:[#allocation5 + $0x48] sm:$0xff]
    %v87 = vld [vmem:[#allocation5 + $0x50] sm:$0xff]
    %v88 = vld [vmem:[#allocation5 + $0x58] sm:$0xff]
    %v89 = vld [vmem:[#allocation5 + $0x60] sm:$0xff]
    %v90 = vld [vmem:[#allocation5 + $0x68] sm:$0xff]
    %v91 = vld [vmem:[#allocation5 + $0x70] sm:$0xff]
    %v92 = vld [vmem:[#allocation5 + $0x78] sm:$0xff]
    %v93 = vpack.c.bf16 %v78, %v77
    %v94 = vpack.c.bf16 %v80, %v79
    %v95 = vpack.c.bf16 %v82, %v81
    %v96 = vpack.c.bf16 %v84, %v83
    %v97 = vpack.c.bf16 %v86, %v85
    %v98 = vpack.c.bf16 %v88, %v87
    %v99 = vpack.c.bf16 %v90, %v89
    %v100 = vpack.c.bf16 %v92, %v91
    %v101 = vld [vmem:[%s2] sm:$0xf]
    %v102 = vld [vmem:[%s2 + $0x4] sm:$0xf]
    %s103 = scalar_lea.vmem %s2, 8
    %v104 = vld [vmem:[%s103] sm:$0xf]
    %v105 = vld [vmem:[%s103 + $0x4] sm:$0xf]
    %v108 = vunpack.c.l.b16 %v104
    %v109 = vunpack.c.l.b16 %v105
    %v110 = vpack.c.b16 %v109, %v108
    %vm112 = vcmask 130048
    %v114 = vsel %vm112, %v93, 0
    %v117 = vsel %vm112, %v94, 0
    %v120 = vsel %vm112, %v95, 0
    %v123 = vsel %vm112, %v96, 0
    %v126 = vsel %vm112, %v97, 0
    %v129 = vsel %vm112, %v98, 0
    %v132 = vsel %vm112, %v99, 0
    %v135 = vsel %vm112, %v100, 0
    %137 = vmatprep.subr.bf16.mxu0 0
    %138 = vmatpush1.bf16.msra.mxu0 %v110
    %139 = vmatprep.subr.bf16.mxu0 0
    %140 = vmatpush1.bf16.msra.mxu0 0
    %141 = vmatprep.subr.bf16.mxu0 0
    %142 = vmatpush1.bf16.msra.mxu0 0
    %143 = vmatprep.subr.bf16.mxu0 0
    %144 = vmatpush1.bf16.msra.mxu0 0
    %145 = vmatprep.subr.bf16.mxu0 0
    %146 = vmatpush1.bf16.msra.mxu0 0
    %147 = vmatprep.subr.bf16.mxu0 0
    %148 = vmatpush1.bf16.msra.mxu0 0
    %149 = vmatprep.subr.bf16.mxu0 0
    %150 = vmatpush1.bf16.msra.mxu0 0
    %151 = vmatprep.subr.bf16.mxu0 0
    %152 = vmatpush1.bf16.msra.mxu0 0
    %153 = vmatprep.subr.bf16.mxu0 0
    %154 = vmatpush1.bf16.msra.mxu0 0
    %155 = vmatprep.subr.bf16.mxu0 0
    %156 = vmatpush1.bf16.msra.mxu0 0
    %157 = vmatprep.subr.bf16.mxu0 0
    %158 = vmatpush1.bf16.msra.mxu0 0
    %159 = vmatprep.subr.bf16.mxu0 0
    %160 = vmatpush1.bf16.msra.mxu0 0
    %161 = vmatprep.subr.bf16.mxu0 0
    %162 = vmatpush1.bf16.msra.mxu0 0
    %163 = vmatprep.subr.bf16.mxu0 0
    %164 = vmatpush1.bf16.msra.mxu0 0
    %165 = vmatprep.subr.bf16.mxu0 0
    %166 = vmatpush1.bf16.msra.mxu0 0
    %167 = vmatprep.subr.bf16.mxu0 0
    %168 = vmatpush1.bf16.msra.mxu0 0
    %169 = vmatprep.mubr.bf16.mxu0 0
    %170 = vmatmul.mubr.bf16.gmra.mrb[0].mxu0 %v114
    %v171 = vpop.f32.mrb[0].mxu0
    %v172 = vadd.f32 0.0, %v171
    %v173 = vpop.f32.mrb[0].mxu0
    %v174 = vpop.f32.mrb[0].mxu0
    %v175 = vadd.f32 0.0, %v174
    %v176 = vpop.f32.mrb[0].mxu0
    %177 = vmatprep.mubr.bf16.mxu0 0
    %178 = vmatmul.mubr.bf16.gmra.mrb[0].mxu0 %v117
    %v179 = vpop.f32.mrb[0].mxu0
    %v180 = vadd.f32 0.0, %v179
    %v181 = vpop.f32.mrb[0].mxu0
    %v182 = vpop.f32.mrb[0].mxu0
    %v183 = vadd.f32 0.0, %v182
    %v184 = vpop.f32.mrb[0].mxu0
    %185 = vmatprep.mubr.bf16.mxu0 0
    %186 = vmatmul.mubr.bf16.gmra.mrb[0].mxu0 %v120
    %v187 = vpop.f32.mrb[0].mxu0
    %v188 = vadd.f32 0.0, %v187
    %v189 = vpop.f32.mrb[0].mxu0
    %v190 = vpop.f32.mrb[0].mxu0
    %v191 = vadd.f32 0.0, %v190
    %v192 = vpop.f32.mrb[0].mxu0
    %193 = vmatprep.mubr.bf16.mxu0 0
    %194 = vmatmul.mubr.bf16.gmra.mrb[0].mxu0 %v123
    %v195 = vpop.f32.mrb[0].mxu0
    %v196 = vadd.f32 0.0, %v195
    %v197 = vpop.f32.mrb[0].mxu0
    %v198 = vpop.f32.mrb[0].mxu0
    %v199 = vadd.f32 0.0, %v198
    %v200 = vpop.f32.mrb[0].mxu0
    %201 = vmatprep.mubr.bf16.mxu0 0
    %202 = vmatmul.mubr.bf16.gmra.mrb[0].mxu0 %v126
    %v203 = vpop.f32.mrb[0].mxu0
    %v204 = vadd.f32 0.0, %v203
    %v205 = vpop.f32.mrb[0].mxu0
    %v206 = vpop.f32.mrb[0].mxu0
    %v207 = vadd.f32 0.0, %v206
    %v208 = vpop.f32.mrb[0].mxu0
    %209 = vmatprep.mubr.bf16.mxu0 0
    %210 = vmatmul.mubr.bf16.gmra.mrb[0].mxu0 %v129
    %v211 = vpop.f32.mrb[0].mxu0
    %v212 = vadd.f32 0.0, %v211
    %v213 = vpop.f32.mrb[0].mxu0
    %v214 = vpop.f32.mrb[0].mxu0
    %v215 = vadd.f32 0.0, %v214
    %v216 = vpop.f32.mrb[0].mxu0
    %217 = vmatprep.mubr.bf16.mxu0 0
    %218 = vmatmul.mubr.bf16.gmra.mrb[0].mxu0 %v132
    %v219 = vpop.f32.mrb[0].mxu0
    %v220 = vadd.f32 0.0, %v219
    %v221 = vpop.f32.mrb[0].mxu0
    %v222 = vpop.f32.mrb[0].mxu0
    %v223 = vadd.f32 0.0, %v222
    %v224 = vpop.f32.mrb[0].mxu0
    %225 = vmatprep.mubr.bf16.mxu0 0
    %226 = vmatmul.mubr.bf16.gmra.mrb[0].mxu0 %v135
    %v227 = vpop.f32.mrb[0].mxu0
    %v228 = vadd.f32 0.0, %v227
    %v229 = vpop.f32.mrb[0].mxu0
    %v230 = vpop.f32.mrb[0].mxu0
    %v231 = vadd.f32 0.0, %v230
    %v232 = vpop.f32.mrb[0].mxu0
    %233 = vdwg.mxu0
    %v236 = vunpack.c.l.b16 %v101
    %v237 = vunpack.c.l.b16 %v102
    %v238 = vpack.c.b16 %v237, %v236
    %v241 = vsel %vm112, %v69, 0
    %v244 = vsel %vm112, %v70, 0
    %v247 = vsel %vm112, %v71, 0
    %v250 = vsel %vm112, %v72, 0
    %v253 = vsel %vm112, %v73, 0
    %v256 = vsel %vm112, %v74, 0
    %v259 = vsel %vm112, %v75, 0
    %v262 = vsel %vm112, %v76, 0
    %264 = vmatprep.subr.bf16.mxu0 0
    %265 = vmatpush1.bf16.msra.mxu0 %v238
    %266 = vmatprep.subr.bf16.mxu0 0
    %267 = vmatpush1.bf16.msra.mxu0 0
    %268 = vmatprep.subr.bf16.mxu0 0
    %269 = vmatpush1.bf16.msra.mxu0 0
    %270 = vmatprep.subr.bf16.mxu0 0
    %271 = vmatpush1.bf16.msra.mxu0 0
    %272 = vmatprep.subr.bf16.mxu0 0
    %273 = vmatpush1.bf16.msra.mxu0 0
    %274 = vmatprep.subr.bf16.mxu0 0
    %275 = vmatpush1.bf16.msra.mxu0 0
    %276 = vmatprep.subr.bf16.mxu0 0
    %277 = vmatpush1.bf16.msra.mxu0 0
    %278 = vmatprep.subr.bf16.mxu0 0
    %279 = vmatpush1.bf16.msra.mxu0 0
    %280 = vmatprep.subr.bf16.mxu0 0
    %281 = vmatpush1.bf16.msra.mxu0 0
    %282 = vmatprep.subr.bf16.mxu0 0
    %283 = vmatpush1.bf16.msra.mxu0 0
    %284 = vmatprep.subr.bf16.mxu0 0
    %285 = vmatpush1.bf16.msra.mxu0 0
    %286 = vmatprep.subr.bf16.mxu0 0
    %287 = vmatpush1.bf16.msra.mxu0 0
    %288 = vmatprep.subr.bf16.mxu0 0
    %289 = vmatpush1.bf16.msra.mxu0 0
    %290 = vmatprep.subr.bf16.mxu0 0
    %291 = vmatpush1.bf16.msra.mxu0 0
    %292 = vmatprep.subr.bf16.mxu0 0
    %293 = vmatpush1.bf16.msra.mxu0 0
    %294 = vmatprep.subr.bf16.mxu0 0
    %295 = vmatpush1.bf16.msra.mxu0 0
    %296 = vmatprep.mubr.bf16.mxu0 0
    %297 = vmatmul.mubr.bf16.gmra.mrb[0].mxu0 %v241
    %v298 = vpop.f32.mrb[0].mxu0
    %v299 = vadd.f32 %v172, %v298
    %v300 = vpop.f32.mrb[0].mxu0
    %v301 = vpop.f32.mrb[0].mxu0
    %v302 = vadd.f32 %v175, %v301
    %v303 = vpop.f32.mrb[0].mxu0
    %304 = vmatprep.mubr.bf16.mxu0 0
    %305 = vmatmul.mubr.bf16.gmra.mrb[0].mxu0 %v244
    %v306 = vpop.f32.mrb[0].mxu0
    %v307 = vadd.f32 %v180, %v306
    %v308 = vpop.f32.mrb[0].mxu0
    %v309 = vpop.f32.mrb[0].mxu0
    %v310 = vadd.f32 %v183, %v309
    %v311 = vpop.f32.mrb[0].mxu0
    %312 = vmatprep.mubr.bf16.mxu0 0
    %313 = vmatmul.mubr.bf16.gmra.mrb[0].mxu0 %v247
    %v314 = vpop.f32.mrb[0].mxu0
    %v315 = vadd.f32 %v188, %v314
    %v316 = vpop.f32.mrb[0].mxu0
    %v317 = vpop.f32.mrb[0].mxu0
    %v318 = vadd.f32 %v191, %v317
    %v319 = vpop.f32.mrb[0].mxu0
    %320 = vmatprep.mubr.bf16.mxu0 0
    %321 = vmatmul.mubr.bf16.gmra.mrb[0].mxu0 %v250
    %v322 = vpop.f32.mrb[0].mxu0
    %v323 = vadd.f32 %v196, %v322
    %v324 = vpop.f32.mrb[0].mxu0
    %v325 = vpop.f32.mrb[0].mxu0
    %v326 = vadd.f32 %v199, %v325
    %v327 = vpop.f32.mrb[0].mxu0
    %328 = vmatprep.mubr.bf16.mxu0 0
    %329 = vmatmul.mubr.bf16.gmra.mrb[0].mxu0 %v253
    %v330 = vpop.f32.mrb[0].mxu0
    %v331 = vadd.f32 %v204, %v330
    %v332 = vpop.f32.mrb[0].mxu0
    %v333 = vpop.f32.mrb[0].mxu0
    %v334 = vadd.f32 %v207, %v333
    %v335 = vpop.f32.mrb[0].mxu0
    %336 = vmatprep.mubr.bf16.mxu0 0
    %337 = vmatmul.mubr.bf16.gmra.mrb[0].mxu0 %v256
    %v338 = vpop.f32.mrb[0].mxu0
    %v339 = vadd.f32 %v212, %v338
    %v340 = vpop.f32.mrb[0].mxu0
    %v341 = vpop.f32.mrb[0].mxu0
    %v342 = vadd.f32 %v215, %v341
    %v343 = vpop.f32.mrb[0].mxu0
    %344 = vmatprep.mubr.bf16.mxu0 0
    %345 = vmatmul.mubr.bf16.gmra.mrb[0].mxu0 %v259
    %v346 = vpop.f32.mrb[0].mxu0
    %v347 = vadd.f32 %v220, %v346
    %v348 = vpop.f32.mrb[0].mxu0
    %v349 = vpop.f32.mrb[0].mxu0
    %v350 = vadd.f32 %v223, %v349
    %v351 = vpop.f32.mrb[0].mxu0
    %352 = vmatprep.mubr.bf16.mxu0 0
    %353 = vmatmul.mubr.bf16.gmra.mrb[0].mxu0 %v262
    %v354 = vpop.f32.mrb[0].mxu0
    %v355 = vadd.f32 %v228, %v354
    %v356 = vpop.f32.mrb[0].mxu0
    %v357 = vpop.f32.mrb[0].mxu0
    %v358 = vadd.f32 %v231, %v357
    %v359 = vpop.f32.mrb[0].mxu0
    %360 = vdwg.mxu0
    %v361 = vld [vmem:[%s4] sm:$0x1]
    %v363 = vlaneseq
    %v364 = vshrl.u32 %v363, 7
    %v365 = vsub.s32 0, %v364
    %v366 = vrot.slane %v361, %v365
    %v368 = vadd.f32 %v299, %v366
    %v369 = vadd.f32 %v302, %v366
    %v370 = vadd.f32 %v307, %v366
    %v371 = vadd.f32 %v310, %v366
    %v372 = vadd.f32 %v315, %v366
    %v373 = vadd.f32 %v318, %v366
    %v374 = vadd.f32 %v323, %v366
    %v375 = vadd.f32 %v326, %v366
    %v376 = vadd.f32 %v331, %v366
    %v377 = vadd.f32 %v334, %v366
    %v378 = vadd.f32 %v339, %v366
    %v379 = vadd.f32 %v342, %v366
    %v380 = vadd.f32 %v347, %v366
    %v381 = vadd.f32 %v350, %v366
    %v382 = vadd.f32 %v355, %v366
    %v383 = vadd.f32 %v358, %v366
    %v384 = vmax.f32 %v368, 0.0
    %v385 = vmax.f32 %v369, 0.0
    %v386 = vmax.f32 %v370, 0.0
    %v387 = vmax.f32 %v371, 0.0
    %v388 = vmax.f32 %v372, 0.0
    %v389 = vmax.f32 %v373, 0.0
    %v390 = vmax.f32 %v374, 0.0
    %v391 = vmax.f32 %v375, 0.0
    %v392 = vmax.f32 %v376, 0.0
    %v393 = vmax.f32 %v377, 0.0
    %v394 = vmax.f32 %v378, 0.0
    %v395 = vmax.f32 %v379, 0.0
    %v396 = vmax.f32 %v380, 0.0
    %v397 = vmax.f32 %v381, 0.0
    %v398 = vmax.f32 %v382, 0.0
    %v399 = vmax.f32 %v383, 0.0
    %400 = vxpose.xlu0.b32.start [1/16] %v384, 128
    %401 = vxpose.xlu0.b32.cont [2/16] %v385, 128
    %402 = vxpose.xlu0.b32.cont [3/16] %v386, 128
    %403 = vxpose.xlu0.b32.cont [4/16] %v387, 128
    %404 = vxpose.xlu0.b32.cont [5/16] %v388, 128
    %405 = vxpose.xlu0.b32.cont [6/16] %v389, 128
    %406 = vxpose.xlu0.b32.cont [7/16] %v390, 128
    %407 = vxpose.xlu0.b32.cont [8/16] %v391, 128
    %408 = vxpose.xlu0.b32.cont [9/16] %v392, 128
    %409 = vxpose.xlu0.b32.cont [10/16] %v393, 128
    %410 = vxpose.xlu0.b32.cont [11/16] %v394, 128
    %411 = vxpose.xlu0.b32.cont [12/16] %v395, 128
    %412 = vxpose.xlu0.b32.cont [13/16] %v396, 128
    %413 = vxpose.xlu0.b32.cont [14/16] %v397, 128
    %414 = vxpose.xlu0.b32.cont [15/16] %v398, 128
    %415 = vxpose.xlu0.b32.end [16/16] %v399, 128
    %v416 = vpop.trf.xlu0
    %v417 = vpop.trf.xlu0
    %v418 = vpop.trf.xlu0
    %v419 = vpop.trf.xlu0
    %v420 = vpop.trf.xlu0
    %v421 = vpop.trf.xlu0
    %v422 = vpop.trf.xlu0
    %v423 = vpop.trf.xlu0
    %v424 = vpop.trf.xlu0
    %v425 = vpop.trf.xlu0
    %v426 = vpop.trf.xlu0
    %v427 = vpop.trf.xlu0
    %v428 = vpop.trf.xlu0
    %v429 = vpop.trf.xlu0
    %v430 = vpop.trf.xlu0
    %v431 = vpop.trf.xlu0
    %v432 = vpack.c.bf16 %v417, %v416
    %v433 = vpack.c.bf16 %v419, %v418
    %v434 = vld [vmem:[%s3] sm:$0xf]
    %v435 = vld [vmem:[%s3 + $0x4] sm:$0xf]
    %v436 = vld [vmem:[%s3 + $0x8] sm:$0xf]
    %v437 = vld [vmem:[%s3 + $0xc] sm:$0xf]
    %v438 = vld [vmem:[%s5] sm:$0xff]
    %v439 = vld [vmem:[%s5 + $0x8] sm:$0xff]
    %v440 = vld [vmem:[%s5 + $0x10] sm:$0xff]
    %v441 = vld [vmem:[%s5 + $0x18] sm:$0xff]
    %443 = vset.pattern.permute.xlu0 0
    %444 = vperm.xlu0 %443, %v438
    %v445 = vpop.permute.xlu0 %444
    %448 = vset.pattern.permute.xlu0 0
    %449 = vperm.xlu0 %448, %v439
    %v450 = vpop.permute.xlu0 %449
    %453 = vset.pattern.permute.xlu0 0
    %454 = vperm.xlu0 %453, %v440
    %v455 = vpop.permute.xlu0 %454
    %458 = vset.pattern.permute.xlu0 0
    %459 = vperm.xlu0 %458, %v441
    %v460 = vpop.permute.xlu0 %459
    %v466 = vunpack.c.l.b16 %v434
    %v467 = vunpack.c.l.b16 %v435
    %v468 = vunpack.c.l.b16 %v436
    %v469 = vunpack.c.l.b16 %v437
    %v470 = vpack.c.b16 %v467, %v466
    %v471 = vpack.c.b16 %v469, %v468
    %vm472 = vcmask 261120
    %v474 = vsel %vm472, %v470, 0
    %v477 = vsel %vm472, %v471, 0
    %479 = vmatprep.subr.bf16.mxu0 0
    %480 = vmatpush1.bf16.msra.mxu0 %v432
    %481 = vmatprep.subr.bf16.mxu0 0
    %482 = vmatpush1.bf16.msra.mxu0 %v433
    %483 = vmatprep.subr.bf16.mxu0 0
    %484 = vmatpush1.bf16.msra.mxu0 0
    %485 = vmatprep.subr.bf16.mxu0 0
    %486 = vmatpush1.bf16.msra.mxu0 0
    %487 = vmatprep.subr.bf16.mxu0 0
    %488 = vmatpush1.bf16.msra.mxu0 0
    %489 = vmatprep.subr.bf16.mxu0 0
    %490 = vmatpush1.bf16.msra.mxu0 0
    %491 = vmatprep.subr.bf16.mxu0 0
    %492 = vmatpush1.bf16.msra.mxu0 0
    %493 = vmatprep.subr.bf16.mxu0 0
    %494 = vmatpush1.bf16.msra.mxu0 0
    %495 = vmatprep.subr.bf16.mxu0 0
    %496 = vmatpush1.bf16.msra.mxu0 0
    %497 = vmatprep.subr.bf16.mxu0 0
    %498 = vmatpush1.bf16.msra.mxu0 0
    %499 = vmatprep.subr.bf16.mxu0 0
    %500 = vmatpush1.bf16.msra.mxu0 0
    %501 = vmatprep.subr.bf16.mxu0 0
    %502 = vmatpush1.bf16.msra.mxu0 0
    %503 = vmatprep.subr.bf16.mxu0 0
    %504 = vmatpush1.bf16.msra.mxu0 0
    %505 = vmatprep.subr.bf16.mxu0 0
    %506 = vmatpush1.bf16.msra.mxu0 0
    %507 = vmatprep.subr.bf16.mxu0 0
    %508 = vmatpush1.bf16.msra.mxu0 0
    %509 = vmatprep.subr.bf16.mxu0 0
    %510 = vmatpush1.bf16.msra.mxu0 0
    %511 = vmatprep.mubr.bf16.mxu0 0
    %512 = vmatmul.mubr.bf16.gmra.mrb[0].mxu0 %v474
    %v513 = vpop.f32.mrb[0].mxu0
    %v514 = vadd.f32 %v445, %v513
    %v515 = vpop.f32.mrb[0].mxu0
    %v516 = vpop.f32.mrb[0].mxu0
    %v517 = vadd.f32 %v450, %v516
    %v518 = vpop.f32.mrb[0].mxu0
    %519 = vmatprep.mubr.bf16.mxu0 0
    %520 = vmatmul.mubr.bf16.gmra.mrb[0].mxu0 %v477
    %v521 = vpop.f32.mrb[0].mxu0
    %v522 = vadd.f32 %v455, %v521
    %v523 = vpop.f32.mrb[0].mxu0
    %v524 = vpop.f32.mrb[0].mxu0
    %v525 = vadd.f32 %v460, %v524
    %v526 = vpop.f32.mrb[0].mxu0
    %527 = vdwg.mxu0
    %v528 = vmax.f32 %v514, 0.0
    %v529 = vmax.f32 %v517, 0.0
    %v530 = vmax.f32 %v522, 0.0
    %v531 = vmax.f32 %v525, 0.0
    %v532 = vpack.c.bf16 %v529, %v528
    %v533 = vpack.c.bf16 %v531, %v530
    %s534 = scalar_lea.vmem %s3, 16
    %v535 = vld [vmem:[%s534] sm:$0xf]
    %v536 = vld [vmem:[%s534 + $0x4] sm:$0xf]
    %v537 = vld [vmem:[%s534 + $0x8] sm:$0xf]
    %v538 = vld [vmem:[%s534 + $0xc] sm:$0xf]
    %539 = vset.pattern.permute.xlu0 1
    %540 = vperm.xlu0 %539, %v438
    %v541 = vpop.permute.xlu0 %540
    %543 = vset.pattern.permute.xlu0 1
    %544 = vperm.xlu0 %543, %v439
    %v545 = vpop.permute.xlu0 %544
    %547 = vset.pattern.permute.xlu0 1
    %548 = vperm.xlu0 %547, %v440
    %v549 = vpop.permute.xlu0 %548
    %551 = vset.pattern.permute.xlu0 1
    %552 = vperm.xlu0 %551, %v441
    %v553 = vpop.permute.xlu0 %552
    %v559 = vunpack.c.l.b16 %v535
    %v560 = vunpack.c.l.b16 %v536
    %v561 = vunpack.c.l.b16 %v537
    %v562 = vunpack.c.l.b16 %v538
    %v563 = vpack.c.b16 %v560, %v559
    %v564 = vpack.c.b16 %v562, %v561
    %v566 = vsel %vm472, %v563, 0
    %v569 = vsel %vm472, %v564, 0
    %571 = vmatprep.subr.bf16.mxu0 0
    %572 = vmatpush1.bf16.msra.mxu0 %v532
    %573 = vmatprep.subr.bf16.mxu0 0
    %574 = vmatpush1.bf16.msra.mxu0 %v533
    %575 = vmatprep.subr.bf16.mxu0 0
    %576 = vmatpush1.bf16.msra.mxu0 0
    %577 = vmatprep.subr.bf16.mxu0 0
    %578 = vmatpush1.bf16.msra.mxu0 0
    %579 = vmatprep.subr.bf16.mxu0 0
    %580 = vmatpush1.bf16.msra.mxu0 0
    %581 = vmatprep.subr.bf16.mxu0 0
    %582 = vmatpush1.bf16.msra.mxu0 0
    %583 = vmatprep.subr.bf16.mxu0 0
    %584 = vmatpush1.bf16.msra.mxu0 0
    %585 = vmatprep.subr.bf16.mxu0 0
    %586 = vmatpush1.bf16.msra.mxu0 0
    %587 = vmatprep.subr.bf16.mxu0 0
    %588 = vmatpush1.bf16.msra.mxu0 0
    %589 = vmatprep.subr.bf16.mxu0 0
    %590 = vmatpush1.bf16.msra.mxu0 0
    %591 = vmatprep.subr.bf16.mxu0 0
    %592 = vmatpush1.bf16.msra.mxu0 0
    %593 = vmatprep.subr.bf16.mxu0 0
    %594 = vmatpush1.bf16.msra.mxu0 0
    %595 = vmatprep.subr.bf16.mxu0 0
    %596 = vmatpush1.bf16.msra.mxu0 0
    %597 = vmatprep.subr.bf16.mxu0 0
    %598 = vmatpush1.bf16.msra.mxu0 0
    %599 = vmatprep.subr.bf16.mxu0 0
    %600 = vmatpush1.bf16.msra.mxu0 0
    %601 = vmatprep.subr.bf16.mxu0 0
    %602 = vmatpush1.bf16.msra.mxu0 0
    %603 = vmatprep.mubr.bf16.mxu0 0
    %604 = vmatmul.mubr.bf16.gmra.mrb[0].mxu0 %v566
    %v605 = vpop.f32.mrb[0].mxu0
    %v606 = vadd.f32 %v541, %v605
    %v607 = vpop.f32.mrb[0].mxu0
    %v608 = vpop.f32.mrb[0].mxu0
    %v609 = vadd.f32 %v545, %v608
    %v610 = vpop.f32.mrb[0].mxu0
    %611 = vmatprep.mubr.bf16.mxu0 0
    %612 = vmatmul.mubr.bf16.gmra.mrb[0].mxu0 %v569
    %v613 = vpop.f32.mrb[0].mxu0
    %v614 = vadd.f32 %v549, %v613
    %v615 = vpop.f32.mrb[0].mxu0
    %v616 = vpop.f32.mrb[0].mxu0
    %v617 = vadd.f32 %v553, %v616
    %v618 = vpop.f32.mrb[0].mxu0
    %619 = vdwg.mxu0
    %v620 = vmax.f32 %v606, 0.0
    %v621 = vmax.f32 %v609, 0.0
    %v622 = vmax.f32 %v614, 0.0
    %v623 = vmax.f32 %v617, 0.0
    %v624 = vpack.c.bf16 %v621, %v620
    %v625 = vpack.c.bf16 %v623, %v622
    %v626 = vld [vmem:[%s5] sm:$0x1]
    %v627 = vunpack.c.l.bf16 %v624
    %v628 = vunpack.c.h.bf16 %v624
    %v629 = vunpack.c.l.bf16 %v625
    %v630 = vunpack.c.h.bf16 %v625
    %631 = vset.pattern.permute.xlu0 2
    %632 = vperm.xlu0 %631, %v438
    %v633 = vpop.permute.xlu0 %632
    %635 = vset.pattern.permute.xlu0 2
    %636 = vperm.xlu0 %635, %v439
    %v637 = vpop.permute.xlu0 %636
    %639 = vset.pattern.permute.xlu0 2
    %640 = vperm.xlu0 %639, %v440
    %v641 = vpop.permute.xlu0 %640
    %643 = vset.pattern.permute.xlu0 2
    %644 = vperm.xlu0 %643, %v441
    %v645 = vpop.permute.xlu0 %644
    %v647 = vmul.f32 %v627, %v633
    %v648 = vmul.f32 %v628, %v637
    %v649 = vmul.f32 %v629, %v641
    %v650 = vmul.f32 %v630, %v645
    %v651 = vadd.f32 %v647, %v648
    %v652 = vadd.f32 %v651, %v649
    %v653 = vadd.f32 %v652, %v650
    %v654 = vrot.slane %v653, 4
    %v655 = vadd.f32 %v653, %v654
    %v656 = vrot.slane %v655, 2
    %v657 = vadd.f32 %v655, %v656
    %v658 = vrot.slane %v657, 1
    %v659 = vadd.f32 %v657, %v658
    %661 = vset.pattern.permute.xlu0 3
    %662 = vperm.xlu0 %661, %v626
    %v663 = vpop.permute.xlu0 %662
    %v665 = vadd.f32 %v659, %v663
    %666 = vst [vmem:[#allocation7] sm:$0x1] %v665
    // Predicated region
    $region34: #{reward_predictor_forward.1} parent=1 // pred_check
      _
    $region35: #{reward_predictor_forward.1} parent=1 // pred_check_branch
      %668 = sbr.rel (0) target = $region37
    $region36: #{reward_predictor_forward.1} parent=1 // pred_region
      %s670 = ssub.s32 16, 16
      %671 = vsyncadd [#allocation4], %s670
      %s673 = sshll.u32 [#allocation7], 4
      %s674 = int_to_ptr.vmem [resolvable:$true] %s673
      %676 = dma.vmem_to_hbm [thread:$0]  %s674, 16, %s6, [#allocation4]
    $region37: #{reward_predictor_forward.1} parent=1 // pred_fallthru
      _
    // Predicated region
    $region38: #{reward_predictor_forward.1} parent=1 // pred_check
      _
    $region39: #{reward_predictor_forward.1} parent=1 // pred_check_branch
      %678 = sbr.rel (0) target = $region41
    $region40: #{reward_predictor_forward.1} parent=1 // pred_region
      %679 = dma.done [#allocation4], 16
    $region41: #{reward_predictor_forward.1} parent=1 // pred_fallthru
      _
    %680 = vsyncpa [#allocation3], 1
    %681 = vsyncpa [#allocation6], 1
    %682 = vsyncpa [#allocation4], 1

</llo_original>
